<compile_context>
chip_gen: v7x
topology: tpu7x:2x2x1
jax: 0.10.0
libtpu: 0.0.40
codegen_flags: <defaults>
</compile_context>

<pallas_src>
import math

import jax
import jax.numpy as jnp
from jax import lax
from jax.experimental import pallas as pl
from jax.experimental.pallas import tpu as pltpu


def make_magface_kernel(margin_am, scale, class_tile):
    def kernel(labels_ref, inv_xnorm_ref, cos_m_ref, sin_m_ref, inv_wnorm_ref,
               feats_ref, w_ref, out_ref):
        # Raw (un-normalized) matmul on the MXU with f32 accumulation.  The
        # feature / weight normalizations are folded in post-matmul via the
        # precomputed (bt,1) and (1,tc) reciprocal-norm vectors.
        raw = jnp.dot(feats_ref[...], w_ref[...],
                      preferred_element_type=jnp.float32)            # (bt, tc)
        cos_theta = jnp.clip(raw * inv_xnorm_ref[...] * inv_wnorm_ref[...],
                             -1.0, 1.0)

        cos_m = cos_m_ref[...]                                        # (bt, 1)
        sin_m = sin_m_ref[...]                                        # (bt, 1)
        sin_theta = jnp.sqrt(jnp.maximum(1.0 - cos_theta * cos_theta, 0.0))
        cos_theta_m = cos_theta * cos_m - sin_theta * sin_m
        # cos(pi - m) == -cos(m)
        cos_theta_m = jnp.where(cos_theta > -cos_m,
                                cos_theta_m,
                                cos_theta - margin_am)

        # One-hot scatter of the margin onto the true-label column.  Shift the
        # (bt,1) labels by j*tc instead of adding j*tc to the full iota tile.
        j = pl.program_id(1)                                          # class-tile axis
        bt, tc = cos_theta.shape
        local_labels = labels_ref[...] - j * class_tile               # (bt, 1)
        col_ids = lax.broadcasted_iota(jnp.int32, (bt, tc), 1)
        onehot = col_ids == local_labels

        out_ref[...] = (jnp.where(onehot, cos_theta_m, cos_theta)
                        * scale).astype(out_ref.dtype)

    return kernel


def magface_forward(feats, weight, labels, *, margin_am=0.0, scale=32,
                    l_a=10, u_a=110, l_margin=0.45, u_margin=0.8,
                    class_tile=2048, batch_tile=None, out_dtype=jnp.float32,
                    vmem_budget_bytes=None):
    B, D = feats.shape
    D2, C = weight.shape
    assert D == D2
    labels2d = labels.reshape(B, 1).astype(jnp.int32)

    # ---- hoisted per-row quantities (computed once, not once per class tile) ----
    f32 = feats.astype(jnp.float32)
    norm_sq = jnp.sum(f32 * f32, axis=1, keepdims=True)               # (B, 1)
    x_norm_raw = jnp.sqrt(norm_sq)
    # F.normalize eps=1e-12:  1/max(||f||,1e-12) == rsqrt(max(||f||^2, 1e-24))
    inv_xnorm = lax.rsqrt(jnp.maximum(norm_sq, 1e-24))
    x_norm = jnp.clip(x_norm_raw, l_a, u_a)
    slope = (u_margin - l_margin) / (u_a - l_a)
    ada_margin = slope * (x_norm - l_a) + l_margin
    cos_m = jnp.cos(ada_margin)
    sin_m = jnp.sin(ada_margin)

    # ---- hoisted per-column weight reciprocal norm (once, not per batch tile) ----
    # TODO(synk): fp8 (v7x) / int8 (v6e) weight streaming would fold its
    # per-column dequant scale into inv_wnorm here.
    w32 = weight.astype(jnp.float32)
    inv_wnorm = lax.rsqrt(jnp.maximum(
        jnp.sum(w32 * w32, axis=0, keepdims=True), 1e-24))            # (1, C)

    # ---- pad class dim to a multiple of 128 so the tiled fast path always works ----
    Cp = ((C + 127) // 128) * 128
    if Cp != C:
        weight = jnp.pad(weight, ((0, 0), (0, Cp - C)))
        inv_wnorm = jnp.pad(inv_wnorm, ((0, 0), (0, Cp - C)))

    itemsize_w = jnp.dtype(weight.dtype).itemsize
    itemsize_f = jnp.dtype(feats.dtype).itemsize
    itemsize_o = jnp.dtype(out_dtype).itemsize

    # ---- generation-aware VMEM budget (64 MiB on v7x, 128 MiB on v5e/v6e) ----
    try:
        vmem_cap = int(pltpu.get_tpu_info().vmem_capacity_bytes)
    except Exception:
        vmem_cap = 128 * 1024 * 1024
    if vmem_budget_bytes is None:
        vmem_budget_bytes = (36 * 1024 * 1024 if vmem_cap <= 64 * 1024 * 1024
                             else 56 * 1024 * 1024)

    def tile_bytes(bt, tc):
        return (2 * D * tc * itemsize_w          # double-buffered weight tiles
                + 2 * bt * tc * itemsize_o       # double-buffered output tiles
                + 2 * bt * D * itemsize_f        # feats blocks (resident over j)
                + 2 * tc * 4                     # inv_wnorm tiles
                + 8 * bt * 4                     # labels + 3 row-param blocks
                + 5 * bt * tc * 4)               # live (bt,tc) f32 intermediates

    # ---- batch tile: as large as possible (weight HBM stream ~ B/bt) ----
    if batch_tile is None:
        if B <= 1024:
            batch_tile = B
        else:
            batch_tile = next((t for t in (1024, 512, 256, 128) if B % t == 0), B)
    assert B % batch_tile == 0
    assert batch_tile == B or batch_tile % 8 == 0
    bt = batch_tile

    # ---- class tile: largest multiple of 128 dividing Cp that fits the budget ----
    def pick_class_tile(bt_):
        tc_ = max(128, (min(class_tile, Cp) // 128) * 128)
        while tc_ > 128 and (Cp % tc_ != 0
                             or tile_bytes(bt_, tc_) > vmem_budget_bytes):
            tc_ -= 128
        return tc_

    tc = pick_class_tile(bt)
    # If even tc=128 blows the budget, halve the batch tile and retry.
    while (tile_bytes(bt, tc) > vmem_budget_bytes and bt > 128
           and bt % 16 == 0 and B % (bt // 2) == 0):
        bt //= 2
        tc = pick_class_tile(bt)

    grid = (B // bt, Cp // tc)

    kernel = make_magface_kernel(float(margin_am), float(scale), tc)

    vmem_limit = int(min(vmem_cap - (4 << 20),
                         max(32 * 1024 * 1024, tile_bytes(bt, tc) + (4 << 20))))

    cost = pl.CostEstimate(
        flops=2 * B * D * Cp,
        transcendentals=B * Cp,
        bytes_accessed=(B * D * itemsize_f
                        + D * Cp * itemsize_w * (B // bt)
                        + 16 * B + 4 * Cp
                        + B * Cp * itemsize_o))

    out = pl.pallas_call(
        kernel,
        out_shape=jax.ShapeDtypeStruct((B, Cp), out_dtype),
        grid_spec=pltpu.PrefetchScalarGridSpec(
            num_scalar_prefetch=0,
            grid=grid,
            in_specs=[
                pl.BlockSpec((bt, 1), lambda i, j: (i, 0)),    # labels
                pl.BlockSpec((bt, 1), lambda i, j: (i, 0)),    # inv_xnorm
                pl.BlockSpec((bt, 1), lambda i, j: (i, 0)),    # cos_m
                pl.BlockSpec((bt, 1), lambda i, j: (i, 0)),    # sin_m
                pl.BlockSpec((1, tc), lambda i, j: (0, j)),    # inv_wnorm tile
                pl.BlockSpec((bt, D), lambda i, j: (i, 0)),    # feats (resident over j)
                pl.BlockSpec((D, tc), lambda i, j: (0, j)),    # weight tile
            ],
            out_specs=pl.BlockSpec((bt, tc), lambda i, j: (i, j)),
        ),
        compiler_params=pltpu.CompilerParams(
            dimension_semantics=("parallel", "parallel"),
            vmem_limit_bytes=vmem_limit),
        cost_estimate=cost,
    )(labels2d, inv_xnorm, cos_m, sin_m, inv_wnorm, feats, weight)

    return out[:, :C] if Cp != C else out


def magface_reference(feats, weight, labels, *, margin_am=0.0, scale=32,
                      l_a=10, u_a=110, l_margin=0.45, u_margin=0.8):
    x_norm = jnp.clip(jnp.linalg.norm(feats, axis=1, keepdims=True), l_a, u_a)
    ada_margin = (u_margin - l_margin) / (u_a - l_a) * (x_norm - l_a) + l_margin
    cos_m, sin_m = jnp.cos(ada_margin), jnp.sin(ada_margin)
    kernel_norm = weight / jnp.maximum(jnp.linalg.norm(weight, axis=0, keepdims=True), 1e-12)
    feats_n = feats / jnp.maximum(jnp.linalg.norm(feats, axis=1, keepdims=True), 1e-12)
    cos_theta = jnp.clip(feats_n @ kernel_norm, -1.0, 1.0)
    sin_theta = jnp.sqrt(jnp.maximum(1.0 - cos_theta ** 2, 0.0))
    cos_theta_m = cos_theta * cos_m - sin_theta * sin_m
    min_cos_theta = jnp.cos(math.pi - ada_margin)
    cos_theta_m = jnp.where(cos_theta > min_cos_theta, cos_theta_m, cos_theta - margin_am)
    onehot = jax.nn.one_hot(labels, weight.shape[1], dtype=jnp.bool_)
    out = jnp.where(onehot, cos_theta_m, cos_theta)
    return out * scale


if __name__ == "__main__":
    # Small, module-consistent shapes: batch=8, feat_dim=32, num_class=256.
    B, D, C = 8, 32, 256
    key = jax.random.PRNGKey(0)
    kf, kw, kl = jax.random.split(key, 3)

    # feats with norms roughly inside [l_a, u_a]
    feats = jax.random.normal(kf, (B, D), dtype=jnp.float32) * 4.0

    # deterministic weight init mimicking: uniform(-1,1).renorm_(2,1,1e-5).mul_(1e5)
    # -> each column renormalized to unit L2 norm.
    w_raw = jax.random.uniform(kw, (D, C), minval=-1.0, maxval=1.0, dtype=jnp.float32)
    col_norm = jnp.linalg.norm(w_raw, axis=0, keepdims=True)
    weight = w_raw / jnp.maximum(col_norm, 1e-12)

    labels = jax.random.randint(kl, (B,), 0, C, dtype=jnp.int32)

    ref = magface_reference(feats, weight, labels)

    # f32 path: tight check against the reference.
    out = jax.block_until_ready(magface_forward(feats, weight, labels))
    assert out.shape == (B, C)
    assert jnp.allclose(out, ref, atol=5e-4, rtol=5e-4), (
        float(jnp.max(jnp.abs(out - ref))))

    # bf16-streamed path (halves weight HBM traffic): loose check vs f32 reference.
    out_bf16 = jax.block_until_ready(
        magface_forward(feats.astype(jnp.bfloat16), weight.astype(jnp.bfloat16), labels))
    assert jnp.allclose(out_bf16, ref, atol=3e-1, rtol=2e-2), (
        float(jnp.max(jnp.abs(out_bf16 - ref))))

    # C not divisible by 128 (padding path).
    C2 = 200
    weight2 = weight[:, :C2]
    labels2 = jnp.minimum(labels, C2 - 1)
    ref2 = magface_reference(feats, weight2, labels2)
    out2 = jax.block_until_ready(magface_forward(feats, weight2, labels2))
    assert out2.shape == (B, C2)
    assert jnp.allclose(out2, ref2, atol=5e-4, rtol=5e-4), (
        float(jnp.max(jnp.abs(out2 - ref2))))

    print("KERNEL_OK")
</pallas_src>

<mosaic_0001>
module attributes {stable_mosaic.version = 11 : i64} {
  func.func @kernel(%arg0: i32, %arg1: i32, %arg2: memref<8x1xi32, #tpu.memory_space<vmem>>, %arg3: memref<8x1xf32, #tpu.memory_space<vmem>>, %arg4: memref<8x1xf32, #tpu.memory_space<vmem>>, %arg5: memref<8x1xf32, #tpu.memory_space<vmem>>, %arg6: memref<1x256xf32, #tpu.memory_space<vmem>>, %arg7: memref<8x32xf32, #tpu.memory_space<vmem>>, %arg8: memref<32x256xf32, #tpu.memory_space<vmem>>, %arg9: memref<8x256xf32, #tpu.memory_space<vmem>>) attributes {dimension_semantics = [#tpu.dimension_semantics<parallel>, #tpu.dimension_semantics<parallel>], iteration_bounds = array<i64: 1, 1>, scalar_prefetch = 0 : i64, scratch_operands = 0 : i64, tpu.core_type = #tpu.core_type<tc>, window_params = [{transform_indices = @transform_0, window_bounds = array<i64: 8, 1>}, {transform_indices = @transform_1, window_bounds = array<i64: 8, 1>}, {transform_indices = @transform_2, window_bounds = array<i64: 8, 1>}, {transform_indices = @transform_3, window_bounds = array<i64: 8, 1>}, {transform_indices = @transform_4, window_bounds = array<i64: 1, 256>}, {transform_indices = @transform_5, window_bounds = array<i64: 8, 32>}, {transform_indices = @transform_6, window_bounds = array<i64: 32, 256>}, {transform_indices = @transform_7, window_bounds = array<i64: 8, 256>}]} {
    %c0 = arith.constant 0 : index
    %c0_0 = arith.constant 0 : index
    %0 = vector.load %arg7[%c0, %c0_0] : memref<8x32xf32, #tpu.memory_space<vmem>>, vector<8x32xf32>
    %c0_1 = arith.constant 0 : index
    %c0_2 = arith.constant 0 : index
    %1 = vector.load %arg8[%c0_1, %c0_2] : memref<32x256xf32, #tpu.memory_space<vmem>>, vector<32x256xf32>
    %cst = arith.constant dense<0.000000e+00> : vector<8x256xf32>
    %2 = tpu.matmul %0, %1, %cst {dimension_numbers = #tpu.dot_dimension_numbers<[1], [0], [0], [1], [0, 0, 1, 1], [], []>} : vector<8x32xf32>, vector<32x256xf32>, vector<8x256xf32> -> vector<8x256xf32>
    %c0_3 = arith.constant 0 : index
    %c0_4 = arith.constant 0 : index
    %3 = vector.load %arg3[%c0_3, %c0_4] : memref<8x1xf32, #tpu.memory_space<vmem>>, vector<8x1xf32>
    %4 = vector.broadcast %3 : vector<8x1xf32> to vector<8x256xf32>
    %5 = arith.mulf %2, %4 : vector<8x256xf32>
    %c0_5 = arith.constant 0 : index
    %c0_6 = arith.constant 0 : index
    %6 = vector.load %arg6[%c0_5, %c0_6] : memref<1x256xf32, #tpu.memory_space<vmem>>, vector<1x256xf32>
    %7 = vector.broadcast %6 : vector<1x256xf32> to vector<8x256xf32>
    %8 = arith.mulf %5, %7 : vector<8x256xf32>
    %cst_7 = arith.constant -1.000000e+00 : f32
    %cst_8 = arith.constant 1.000000e+00 : f32
    %9 = vector.broadcast %cst_7 : f32 to vector<8x256xf32>
    %10 = arith.maximumf %9, %8 : vector<8x256xf32>
    %11 = vector.broadcast %cst_8 : f32 to vector<8x256xf32>
    %12 = arith.minimumf %11, %10 : vector<8x256xf32>
    %c0_9 = arith.constant 0 : index
    %c0_10 = arith.constant 0 : index
    %13 = vector.load %arg4[%c0_9, %c0_10] : memref<8x1xf32, #tpu.memory_space<vmem>>, vector<8x1xf32>
    %c0_11 = arith.constant 0 : index
    %c0_12 = arith.constant 0 : index
    %14 = vector.load %arg5[%c0_11, %c0_12] : memref<8x1xf32, #tpu.memory_space<vmem>>, vector<8x1xf32>
    %15 = arith.mulf %12, %12 : vector<8x256xf32>
    %cst_13 = arith.constant 1.000000e+00 : f32
    %16 = vector.broadcast %cst_13 : f32 to vector<8x256xf32>
    %17 = arith.subf %16, %15 : vector<8x256xf32>
    %cst_14 = arith.constant 0.000000e+00 : f32
    %18 = vector.broadcast %cst_14 : f32 to vector<8x256xf32>
    %19 = arith.maximumf %17, %18 : vector<8x256xf32>
    %20 = math.sqrt %19 : vector<8x256xf32>
    %21 = vector.broadcast %13 : vector<8x1xf32> to vector<8x256xf32>
    %22 = arith.mulf %12, %21 : vector<8x256xf32>
    %23 = vector.broadcast %14 : vector<8x1xf32> to vector<8x256xf32>
    %24 = arith.mulf %20, %23 : vector<8x256xf32>
    %25 = arith.subf %22, %24 : vector<8x256xf32>
    %cst_15 = arith.constant 0.000000e+00 : f32
    %26 = vector.broadcast %cst_15 : f32 to vector<8x1xf32>
    %27 = arith.subf %26, %13 : vector<8x1xf32>
    %28 = vector.broadcast %27 : vector<8x1xf32> to vector<8x256xf32>
    %29 = arith.cmpf ogt, %12, %28 : vector<8x256xf32>
    %cst_16 = arith.constant 0.000000e+00 : f32
    %30 = vector.broadcast %cst_16 : f32 to vector<8x256xf32>
    %31 = arith.subf %12, %30 : vector<8x256xf32>
    %32 = arith.select %29, %25, %31 : vector<8x256xi1>, vector<8x256xf32>
    %c0_17 = arith.constant 0 : index
    %c0_18 = arith.constant 0 : index
    %33 = vector.load %arg2[%c0_17, %c0_18] : memref<8x1xi32, #tpu.memory_space<vmem>>, vector<8x1xi32>
    %c256_i32 = arith.constant 256 : i32
    %34 = arith.muli %arg1, %c256_i32 : i32
    %35 = vector.broadcast %34 : i32 to vector<8x1xi32>
    %36 = arith.subi %33, %35 : vector<8x1xi32>
    %37 = tpu.iota {dimensions = array<i32: 1>} : vector<8x256xi32>
    %38 = vector.broadcast %36 : vector<8x1xi32> to vector<8x256xi32>
    %39 = arith.cmpi eq, %37, %38 : vector<8x256xi32>
    %40 = arith.select %39, %32, %12 : vector<8x256xi1>, vector<8x256xf32>
    %cst_19 = arith.constant 3.200000e+01 : f32
    %41 = vector.broadcast %cst_19 : f32 to vector<8x256xf32>
    %42 = arith.mulf %40, %41 : vector<8x256xf32>
    %c0_20 = arith.constant 0 : index
    %c0_21 = arith.constant 0 : index
    %43 = vector.load %arg9[%c0_20, %c0_21] : memref<8x256xf32, #tpu.memory_space<vmem>>, vector<8x256xf32>
    tpu.vector_store %arg9[%c0_20, %c0_21], %42 {strides = array<i32>} : memref<8x256xf32, #tpu.memory_space<vmem>>, vector<8x256xf32>,
    return
  }
  func.func @transform_0(%arg0: i32, %arg1: i32) -> (i32, i32) {
    %c0_i32 = arith.constant 0 : i32
    %c0_i32_0 = arith.constant 0 : i32
    return %arg0, %c0_i32 : i32, i32
  }
  func.func @transform_1(%arg0: i32, %arg1: i32) -> (i32, i32) {
    %c0_i32 = arith.constant 0 : i32
    %c0_i32_0 = arith.constant 0 : i32
    return %arg0, %c0_i32 : i32, i32
  }
  func.func @transform_2(%arg0: i32, %arg1: i32) -> (i32, i32) {
    %c0_i32 = arith.constant 0 : i32
    %c0_i32_0 = arith.constant 0 : i32
    return %arg0, %c0_i32 : i32, i32
  }
  func.func @transform_3(%arg0: i32, %arg1: i32) -> (i32, i32) {
    %c0_i32 = arith.constant 0 : i32
    %c0_i32_0 = arith.constant 0 : i32
    return %arg0, %c0_i32 : i32, i32
  }
  func.func @transform_4(%arg0: i32, %arg1: i32) -> (i32, i32) {
    %c0_i32 = arith.constant 0 : i32
    %c0_i32_0 = arith.constant 0 : i32
    return %c0_i32, %arg1 : i32, i32
  }
  func.func @transform_5(%arg0: i32, %arg1: i32) -> (i32, i32) {
    %c0_i32 = arith.constant 0 : i32
    %c0_i32_0 = arith.constant 0 : i32
    return %arg0, %c0_i32 : i32, i32
  }
  func.func @transform_6(%arg0: i32, %arg1: i32) -> (i32, i32) {
    %c0_i32 = arith.constant 0 : i32
    %c0_i32_0 = arith.constant 0 : i32
    return %c0_i32, %arg1 : i32, i32
  }
  func.func @transform_7(%arg0: i32, %arg1: i32) -> (i32, i32) {
    %c0_i32 = arith.constant 0 : i32
    return %arg0, %arg1 : i32, i32
  }
}

</mosaic_0001>

<llo_original>
// kernel: tpu_custom_call.1
$region0: #{tpu_custom_call.1}
  #allocation0 [shape = 'u32[]', space=smem, size = 0x4, offset = 0x4, fixed_abs, tag = 'smem constant byte address 0x4 - core index']
  #allocation1 [shape = 'u32[144,128]{1,0:T(1,128)}', space=vmem, size = 0x12000, scoped, tag = 'internal scratch']
  %s0 = inlined_call_operand.vmem [shape: s32[8,1], index: 0, kind: input, shape index: {}]
  %s1 = inlined_call_operand.vmem [shape: f32[8,1], index: 1, kind: input, shape index: {}]
  %s2 = inlined_call_operand.vmem [shape: f32[8,1], index: 2, kind: input, shape index: {}]
  %s3 = inlined_call_operand.vmem [shape: f32[8,1], index: 3, kind: input, shape index: {}]
  %s4 = inlined_call_operand.vmem [shape: f32[1,256], index: 4, kind: input, shape index: {}]
  %s5 = inlined_call_operand.vmem [shape: f32[8,32], index: 5, kind: input, shape index: {}]
  %s6 = inlined_call_operand.hbm [shape: f32[32,256], index: 6, kind: input, shape index: {}]
  %s7 = inlined_call_operand.hbm [shape: f32[8,256], index: 7, kind: output, shape index: {}]
  %s8 = sld [smem:[#allocation0]]
  $region42: #{tpu_custom_call.1} parent=0
    _
  %s10 = ssub.s32 1, %s8
  %s11 = scalar_select 0, %s10, %s8
  $region1: #{tpu_custom_call.1} parent=0
    #allocation2 [shape = 'u8[32768]{0}', space=vmem, size = 0x8000, scoped, tag = 'input window, operand 6, single buffered']
    #allocation3 [shape = 's32[1]{0}', space=sflag, size = 0x4, scoped, tag = 'scoped memory for tpu_custom_call.1']
    #allocation4 [shape = 's32[1]{0}', space=sflag, size = 0x4, scoped, tag = 'scoped memory for tpu_custom_call.1']
    #allocation5 [shape = 'u8[8192]{0}', space=vmem, size = 0x2000, scoped, tag = 'output window, operand 0, single buffered']
    %12 = vsyncpa [#allocation3], 0
    %13 = vsyncpa [#allocation4], 0
    // Predicated region
    $region2: #{tpu_custom_call.1} parent=1 // pred_check
      _
    $region3: #{tpu_custom_call.1} parent=1 // pred_check_branch
      %15 = sbr.rel (0) target = $region5
    $region4: #{tpu_custom_call.1} parent=1 // pred_region
      _
    $region5: #{tpu_custom_call.1} parent=1 // pred_fallthru
      _
    // Predicated region
    $region6: #{tpu_custom_call.1} parent=1 // pred_check
      _
    $region7: #{tpu_custom_call.1} parent=1 // pred_check_branch
      %17 = sbr.rel (0) target = $region9
    $region8: #{tpu_custom_call.1} parent=1 // pred_region
      _
    $region9: #{tpu_custom_call.1} parent=1 // pred_fallthru
      _
    // Predicated region
    $region10: #{tpu_custom_call.1} parent=1 // pred_check
      _
    $region11: #{tpu_custom_call.1} parent=1 // pred_check_branch
      %19 = sbr.rel (0) target = $region13
    $region12: #{tpu_custom_call.1} parent=1 // pred_region
      _
    $region13: #{tpu_custom_call.1} parent=1 // pred_fallthru
      _
    // Predicated region
    $region14: #{tpu_custom_call.1} parent=1 // pred_check
      _
    $region15: #{tpu_custom_call.1} parent=1 // pred_check_branch
      %21 = sbr.rel (0) target = $region17
    $region16: #{tpu_custom_call.1} parent=1 // pred_region
      _
    $region17: #{tpu_custom_call.1} parent=1 // pred_fallthru
      _
    // Predicated region
    $region18: #{tpu_custom_call.1} parent=1 // pred_check
      _
    $region19: #{tpu_custom_call.1} parent=1 // pred_check_branch
      %23 = sbr.rel (0) target = $region21
    $region20: #{tpu_custom_call.1} parent=1 // pred_region
      _
    $region21: #{tpu_custom_call.1} parent=1 // pred_fallthru
      _
    // Predicated region
    $region22: #{tpu_custom_call.1} parent=1 // pred_check
      _
    $region23: #{tpu_custom_call.1} parent=1 // pred_check_branch
      %25 = sbr.rel (0) target = $region25
    $region24: #{tpu_custom_call.1} parent=1 // pred_region
      _
    $region25: #{tpu_custom_call.1} parent=1 // pred_fallthru
      _
    // Predicated region
    $region26: #{tpu_custom_call.1} parent=1 // pred_check
      _
    $region27: #{tpu_custom_call.1} parent=1 // pred_check_branch
      %27 = sbr.rel (0) target = $region29
    $region28: #{tpu_custom_call.1} parent=1 // pred_region
      %s29 = ssub.s32 1024, 1024
      %30 = vsyncadd [#allocation3], %s29
      %s31 = sshll.u32 [#allocation2], 4
      %s32 = int_to_ptr.vmem [resolvable:$true] %s31
      %37 = dma.hbm_to_vmem [thread:$0]  %s6, 1024, %s32, [#allocation3], 256, 256, 16
    $region29: #{tpu_custom_call.1} parent=1 // pred_fallthru
      _
    // Predicated region
    $region30: #{tpu_custom_call.1} parent=1 // pred_check
      _
    $region31: #{tpu_custom_call.1} parent=1 // pred_check_branch
      %39 = sbr.rel (0) target = $region33
    $region32: #{tpu_custom_call.1} parent=1 // pred_region
      %40 = dma.done [#allocation3], 1024
    $region33: #{tpu_custom_call.1} parent=1 // pred_fallthru
      _
    %v41 = vld [vmem:[%s5] sm:$0xff]
    %v42 = vld [vmem:[#allocation2] sm:$0xff]
    %v43 = vld [vmem:[#allocation2 + $0x8] sm:$0xff]
    %v44 = vld [vmem:[#allocation2 + $0x10] sm:$0xff]
    %v45 = vld [vmem:[#allocation2 + $0x18] sm:$0xff]
    %v46 = vld [vmem:[#allocation2 + $0x20] sm:$0xff]
    %v47 = vld [vmem:[#allocation2 + $0x28] sm:$0xff]
    %v48 = vld [vmem:[#allocation2 + $0x30] sm:$0xff]
    %v49 = vld [vmem:[#allocation2 + $0x38] sm:$0xff]
    %vm50 = vcmask 261120
    %v52 = vsel %vm50, %v41, 0
    %54 = vmatprep.subr.mxu0 %v43
    %55 = vmatpush1.msra.mxu0 %v42
    %56 = vmatprep.subr.mxu0 %v45
    %57 = vmatpush1.msra.mxu0 %v44
    %58 = vmatprep.subr.mxu0 %v47
    %59 = vmatpush1.msra.mxu0 %v46
    %60 = vmatprep.subr.mxu0 %v49
    %61 = vmatpush1.msra.mxu0 %v48
    %62 = vmatprep.subr.mxu0 0.0
    %63 = vmatpush1.msra.mxu0 0.0
    %64 = vmatprep.subr.mxu0 0.0
    %65 = vmatpush1.msra.mxu0 0.0
    %66 = vmatprep.subr.mxu0 0.0
    %67 = vmatpush1.msra.mxu0 0.0
    %68 = vmatprep.subr.mxu0 0.0
    %69 = vmatpush1.msra.mxu0 0.0
    %70 = vmatprep.subr.mxu0 0.0
    %71 = vmatpush1.msra.mxu0 0.0
    %72 = vmatprep.subr.mxu0 0.0
    %73 = vmatpush1.msra.mxu0 0.0
    %74 = vmatprep.subr.mxu0 0.0
    %75 = vmatpush1.msra.mxu0 0.0
    %76 = vmatprep.subr.mxu0 0.0
    %77 = vmatpush1.msra.mxu0 0.0
    %78 = vmatprep.subr.mxu0 0.0
    %79 = vmatpush1.msra.mxu0 0.0
    %80 = vmatprep.subr.mxu0 0.0
    %81 = vmatpush1.msra.mxu0 0.0
    %82 = vmatprep.subr.mxu0 0.0
    %83 = vmatpush1.msra.mxu0 0.0
    %84 = vmatprep.subr.mxu0 0.0
    %85 = vmatpush1.msra.mxu0 0.0
    %86 = vmatprep.subr.mxu0 0.0
    %87 = vmatpush1.msra.mxu0 0.0
    %88 = vmatprep.subr.mxu0 0.0
    %89 = vmatpush1.msra.mxu0 0.0
    %90 = vmatprep.subr.mxu0 0.0
    %91 = vmatpush1.msra.mxu0 0.0
    %92 = vmatprep.subr.mxu0 0.0
    %93 = vmatpush1.msra.mxu0 0.0
    %94 = vmatprep.subr.mxu0 0.0
    %95 = vmatpush1.msra.mxu0 0.0
    %96 = vmatprep.subr.mxu0 0.0
    %97 = vmatpush1.msra.mxu0 0.0
    %98 = vmatprep.subr.mxu0 0.0
    %99 = vmatpush1.msra.mxu0 0.0
    %100 = vmatprep.subr.mxu0 0.0
    %101 = vmatpush1.msra.mxu0 0.0
    %102 = vmatprep.subr.mxu0 0.0
    %103 = vmatpush1.msra.mxu0 0.0
    %104 = vmatprep.subr.mxu0 0.0
    %105 = vmatpush1.msra.mxu0 0.0
    %106 = vmatprep.subr.mxu0 0.0
    %107 = vmatpush1.msra.mxu0 0.0
    %108 = vmatprep.subr.mxu0 0.0
    %109 = vmatpush1.msra.mxu0 0.0
    %110 = vmatprep.subr.mxu0 0.0
    %111 = vmatpush1.msra.mxu0 0.0
    %112 = vmatprep.subr.mxu0 0.0
    %113 = vmatpush1.msra.mxu0 0.0
    %114 = vmatprep.subr.mxu0 0.0
    %115 = vmatpush1.msra.mxu0 0.0
    %116 = vmatprep.subr.mxu0 0.0
    %117 = vmatpush1.msra.mxu0 0.0
    %118 = vmatprep.mubr.f32.mxu0 0.0
    %119 = vmatmul.mubr.f32.gmra.mrb[0].mxu0 %v52
    %v120 = vpop.f32.mrb[0].mxu0
    %v121 = vadd.f32 0.0, %v120
    %v122 = vpop.f32.mrb[0].mxu0
    %v123 = vadd.f32 0.0, %v122
    %124 = vdwg.mxu0
    %v125 = vld [vmem:[%s1] sm:$0xff]
    %127 = vset.pattern.permute.xlu0 0
    %128 = vperm.xlu0 %127, %v125
    %v129 = vpop.permute.xlu0 %128
    %v131 = vmul.f32 %v121, %v129
    %v132 = vmul.f32 %v123, %v129
    %v133 = vld [vmem:[%s4] sm:$0x3]
    %v135 = vlaneseq
    %v136 = vshrl.u32 %v135, 7
    %v137 = vsub.s32 0, %v136
    %v138 = vrot.slane %v133, %v137
    %v139 = vlaneseq
    %v140 = vshrl.u32 %v139, 7
    %v141 = vsub.s32 1, %v140
    %v142 = vrot.slane %v133, %v141
    %v145 = vmul.f32 %v131, %v138
    %v146 = vmul.f32 %v132, %v142
    %v147 = vmax.f32 %v145, -1.0
    %v148 = vmax.f32 %v146, -1.0
    %v149 = vmin.f32 %v147, 1.0
    %v150 = vmin.f32 %v148, 1.0
    %v151 = vld [vmem:[%s2] sm:$0xff]
    %v152 = vld [vmem:[%s3] sm:$0xff]
    %v153 = vmul.f32 %v149, %v149
    %v154 = vmul.f32 %v150, %v150
    %v155 = vsub.f32 1.0, %v153
    %v156 = vsub.f32 1.0, %v154
    %v157 = vmax.f32 %v155, 0.0
    %v158 = vmax.f32 %v156, 0.0
    %v159 = vrsqrt.pop %v157
    %v160 = vmul.f32 %v157, %v159
    %vm161 = vcmp.eq.f32.partialorder %v157, inf
    %v162 = vsel %vm161, %v157, %v160
    %vm163 = vcmp.eq.f32.partialorder %v157, 0.0
    %v164 = vand.u32 %v157, 2147483648
    %v165 = vsel %vm163, %v164, %v162
    %v166 = vrsqrt.pop %v158
    %v167 = vmul.f32 %v158, %v166
    %vm168 = vcmp.eq.f32.partialorder %v158, inf
    %v169 = vsel %vm168, %v158, %v167
    %vm170 = vcmp.eq.f32.partialorder %v158, 0.0
    %v171 = vand.u32 %v158, 2147483648
    %v172 = vsel %vm170, %v171, %v169
    %174 = vset.pattern.permute.xlu0 0
    %175 = vperm.xlu0 %174, %v151
    %v176 = vpop.permute.xlu0 %175
    %v178 = vmul.f32 %v149, %v176
    %v179 = vmul.f32 %v150, %v176
    %181 = vset.pattern.permute.xlu0 0
    %182 = vperm.xlu0 %181, %v152
    %v183 = vpop.permute.xlu0 %182
    %v185 = vmul.f32 %v165, %v183
    %v186 = vmul.f32 %v172, %v183
    %v187 = vsub.f32 %v178, %v185
    %v188 = vsub.f32 %v179, %v186
    %v189 = vsub.f32 0.0, %v151
    %191 = vset.pattern.permute.xlu0 0
    %192 = vperm.xlu0 %191, %v189
    %v193 = vpop.permute.xlu0 %192
    %vm195 = vcmp.gt.f32.partialorder %v149, %v193
    %vm196 = vcmp.gt.f32.partialorder %v150, %v193
    %v197 = vsel %vm195, %v187, %v149
    %v198 = vsel %vm196, %v188, %v150
    %v199 = vld [vmem:[%s0] sm:$0xff]
    %s200 = smul.u32 0, 256
    %v201 = vstv %s200
    %v202 = vsub.s32 %v199, %v201
    %v203 = vlaneseq
    %v204 = vand.u32 %v203, 127
    %v205 = vadd.s32 %v204, 128
    %206 = vset.pattern.permute.xlu0 0
    %207 = vperm.xlu0 %206, %v202
    %v208 = vpop.permute.xlu0 %207
    %vm209 = vcmp.eq.s32.totalorder %v204, %v208
    %vm210 = vcmp.eq.s32.totalorder %v205, %v208
    %v211 = vsel %vm209, %v197, %v149
    %v212 = vsel %vm210, %v198, %v150
    %v213 = vmul.f32 %v211, 32.0
    %v214 = vmul.f32 %v212, 32.0
    %215 = vst [vmem:[#allocation5] sm:$0xff] %v213
    %216 = vst [vmem:[#allocation5 + $0x8] sm:$0xff] %v214
    // Predicated region
    $region34: #{tpu_custom_call.1} parent=1 // pred_check
      _
    $region35: #{tpu_custom_call.1} parent=1 // pred_check_branch
      %218 = sbr.rel (0) target = $region37
    $region36: #{tpu_custom_call.1} parent=1 // pred_region
      %s220 = ssub.s32 256, 256
      %221 = vsyncadd [#allocation4], %s220
      %s223 = sshll.u32 [#allocation5], 4
      %s224 = int_to_ptr.vmem [resolvable:$true] %s223
      %226 = dma.vmem_to_hbm [thread:$0]  %s224, 256, %s7, [#allocation4]
    $region37: #{tpu_custom_call.1} parent=1 // pred_fallthru
      _
    // Predicated region
    $region38: #{tpu_custom_call.1} parent=1 // pred_check
      _
    $region39: #{tpu_custom_call.1} parent=1 // pred_check_branch
      %228 = sbr.rel (0) target = $region41
    $region40: #{tpu_custom_call.1} parent=1 // pred_region
      %229 = dma.done [#allocation4], 256
    $region41: #{tpu_custom_call.1} parent=1 // pred_fallthru
      _
    %230 = vsyncpa [#allocation3], 1
    %231 = vsyncpa [#allocation4], 1

</llo_original>
